<compile_context>
chip_gen: v7x
topology: tpu7x:2x2x1
jax: 0.10.0
libtpu: 0.0.40
codegen_flags: <defaults>
</compile_context>

<pallas_src>
import functools

import jax
import jax.numpy as jnp
from jax.experimental import pallas as pl
from jax.experimental.pallas import tpu as pltpu

_NEG_BIG = -1e30  # finite stand-in for -inf (avoids inf-inf -> NaN)


def _round_up(x, m):
    return ((x + m - 1) // m) * m


# ---------------------------------------------------------------------------
# In-kernel helpers shared by the labels-path and explicit-mask kernels.
# ---------------------------------------------------------------------------
def _init_accumulators(j, m_scr, l_scr, s_scr, c_scr):
    @pl.when(j == 0)
    def _():
        m_scr[...] = jnp.full_like(m_scr, _NEG_BIG)
        l_scr[...] = jnp.zeros_like(l_scr)
        s_scr[...] = jnp.zeros_like(s_scr)
        c_scr[...] = jnp.zeros_like(c_scr)


def _tile_logits(a_ref, ct_ref, inv_temp):
    """[tm, D] @ [D, tn] -> f32 [tm, tn], divided by temperature."""
    # Operands stay in their input dtype (bf16 -> native MXU rate); accumulate
    # in f32 and apply the temperature scale once to the f32 accumulator.
    logits = jnp.dot(a_ref[...], ct_ref[...], preferred_element_type=jnp.float32)
    return logits * jnp.float32(inv_temp)


def _keep_mask(i, j, tm, tn, n_valid_cols):
    """Column-validity (padding) and self-exclusion, from cheap 1-D iotas."""
    row_ids = i * tm + jax.lax.broadcasted_iota(jnp.int32, (tm, 1), 0)
    col_ids = j * tn + jax.lax.broadcasted_iota(jnp.int32, (1, tn), 1)
    not_self = row_ids != col_ids                 # broadcast -> [tm, tn]
    col_valid = col_ids < n_valid_cols            # [1, tn]
    return jnp.logical_and(not_self, col_valid)   # broadcast -> [tm, tn]


def _online_update(logits, keep, pos_w_logits, pos_w,
                   m_scr, l_scr, s_scr, c_scr):
    """Flash-style online log-sum-exp + positive-pair accumulation."""
    masked = jnp.where(keep, logits, _NEG_BIG)
    m_prev = m_scr[...]
    m_new = jnp.maximum(m_prev, jnp.max(masked, axis=1, keepdims=True))
    alpha = jnp.exp(m_prev - m_new)
    # second guard keeps all-masked rows exact even when m_new == _NEG_BIG
    p = jnp.where(keep, jnp.exp(masked - m_new), 0.0)
    l_scr[...] = alpha * l_scr[...] + jnp.sum(p, axis=1, keepdims=True)
    m_scr[...] = m_new
    # Accumulate on RAW (un-shifted) logits; the global (max + log l) shift is
    # subtracted only once, at finalize.
    s_scr[...] = s_scr[...] + jnp.sum(pos_w_logits, axis=1, keepdims=True)
    c_scr[...] = c_scr[...] + jnp.sum(pos_w, axis=1, keepdims=True)


def _finalize(j, out_ref, m_scr, l_scr, s_scr, c_scr, loss_scale):
    @pl.when(j == pl.num_programs(1) - 1)
    def _():
        lse = m_scr[...] + jnp.log(l_scr[...])  # log-sum-exp over kept columns
        cnt = c_scr[...]
        mean_log_prob_pos = s_scr[...] / jnp.maximum(cnt, 1.0) - lse
        loss_rows = -jnp.float32(loss_scale) * mean_log_prob_pos
        # Guard rows with no positives (padded rows / degenerate inputs).
        out_ref[...] = jnp.where(cnt > 0.0, loss_rows, 0.0)


# ---------------------------------------------------------------------------
# Kernels.
# ---------------------------------------------------------------------------
def _supcon_labels_kernel(a_ref, ct_ref, albl_ref, clbl_ref, out_ref,
                          m_scr, l_scr, s_scr, c_scr, *,
                          inv_temp, loss_scale, n_valid_cols):
    i = pl.program_id(0)
    j = pl.program_id(1)
    _init_accumulators(j, m_scr, l_scr, s_scr, c_scr)

    logits = _tile_logits(a_ref, ct_ref, inv_temp)
    tm, tn = logits.shape
    keep = _keep_mask(i, j, tm, tn, n_valid_cols)
    # positive-pair mask computed in-kernel from labels (no [M, N] mask DMA);
    # padded labels (-1 rows / -2 cols) can never compare equal.
    pos = jnp.logical_and(keep, albl_ref[...] == clbl_ref[...])
    pos_w_logits = jnp.where(pos, logits, 0.0)
    pos_w = jnp.where(pos, 1.0, 0.0)

    _online_update(logits, keep, pos_w_logits, pos_w, m_scr, l_scr, s_scr, c_scr)
    _finalize(j, out_ref, m_scr, l_scr, s_scr, c_scr, loss_scale)


def _supcon_mask_kernel(a_ref, ct_ref, mask_ref, out_ref,
                        m_scr, l_scr, s_scr, c_scr, *,
                        inv_temp, loss_scale, n_valid_cols):
    i = pl.program_id(0)
    j = pl.program_id(1)
    _init_accumulators(j, m_scr, l_scr, s_scr, c_scr)

    logits = _tile_logits(a_ref, ct_ref, inv_temp)
    tm, tn = logits.shape
    keep = _keep_mask(i, j, tm, tn, n_valid_cols)
    # Explicit masks may be non-binary / asymmetric -> keep the float multiply.
    pos_w = jnp.where(keep, mask_ref[...], 0.0)
    pos_w_logits = pos_w * logits

    _online_update(logits, keep, pos_w_logits, pos_w, m_scr, l_scr, s_scr, c_scr)
    _finalize(j, out_ref, m_scr, l_scr, s_scr, c_scr, loss_scale)


# ---------------------------------------------------------------------------
# pallas_call launcher + public wrapper.
# ---------------------------------------------------------------------------
def _launch(kernel_fn, anchor, contrast_t, extra_arrays, extra_specs,
            m_real, tm, tn, temperature, base_temperature, n_valid_cols):
    m_pad, d = anchor.shape
    n_pad = contrast_t.shape[1]
    grid = (m_pad // tm, n_pad // tn)

    kernel = functools.partial(
        kernel_fn,
        inv_temp=1.0 / float(temperature),
        loss_scale=float(temperature) / float(base_temperature),
        n_valid_cols=int(n_valid_cols))

    out = pl.pallas_call(
        kernel,
        out_shape=jax.ShapeDtypeStruct((m_pad, 1), jnp.float32),
        grid_spec=pltpu.PrefetchScalarGridSpec(
            num_scalar_prefetch=0,
            grid=grid,
            in_specs=[
                pl.BlockSpec((tm, d), lambda i, j: (i, 0)),   # anchor tile
                pl.BlockSpec((d, tn), lambda i, j: (0, j)),   # contrast.T tile
                *extra_specs,
            ],
            out_specs=pl.BlockSpec((tm, 1), lambda i, j: (i, 0)),
            scratch_shapes=[
                pltpu.VMEM((tm, 1), jnp.float32),   # running max   m
                pltpu.VMEM((tm, 1), jnp.float32),   # running sum   l
                pltpu.VMEM((tm, 1), jnp.float32),   # sum(mask * raw logits)
                pltpu.VMEM((tm, 1), jnp.float32),   # sum(mask)
            ],
        ),
        compiler_params=pltpu.CompilerParams(
            dimension_semantics=("parallel", "arbitrary"),
            vmem_limit_bytes=48 * 1024 * 1024,
        ),
    )(anchor, contrast_t, *extra_arrays)

    per_anchor_loss = out[:m_real, 0]
    return jnp.mean(per_anchor_loss)


def supcon_loss(features, labels=None, mask=None, *, temperature=0.07,
                contrast_mode='all', base_temperature=0.07,
                block_m=256, block_n=1024):
    """JAX/Pallas equivalent of SupConLoss.forward.

    features: [bsz, n_views, ...]   (flattened to [bsz, n_views, dim])
    labels:   [bsz] int class ids, optional
    mask:     [bsz, bsz] float, optional (mutually exclusive with labels)
    """
    if features.ndim < 3:
        raise ValueError('`features` needs to be [bsz, n_views, ...],'
                         'at least 3 dimensions are required')
    if features.ndim > 3:
        features = features.reshape(features.shape[0], features.shape[1], -1)
    bsz, n_views, dim = features.shape

    if labels is not None and mask is not None:
        raise ValueError('Cannot define both `labels` and `mask`')

    contrast_count = n_views
    # View-major contrast order: column (v*bsz + b) == features[b, v]
    # (== torch.cat(torch.unbind(features, 1), 0)), pre-transposed to [D, N].
    contrast_t = jnp.transpose(features, (2, 1, 0)).reshape(
        dim, contrast_count * bsz)

    if contrast_mode == 'one':
        anchor = features[:, 0]
        anchor_count = 1
    elif contrast_mode == 'all':
        anchor = jnp.transpose(features, (1, 0, 2)).reshape(
            contrast_count * bsz, dim)
        anchor_count = contrast_count
    else:
        raise ValueError('Unknown mode: {}'.format(contrast_mode))

    m_real = anchor_count * bsz
    n_real = contrast_count * bsz

    # Tile sizes: multiples of (8, 128); defaults (256, 1024) are 256-aligned
    # for the v6e/v7x MXU and sized well inside v7x's 64 MiB VMEM.
    tm = _round_up(min(int(block_m), _round_up(m_real, 8)), 8)
    tn = _round_up(min(int(block_n), _round_up(n_real, 128)), 128)
    m_pad = _round_up(m_real, tm)
    n_pad = _round_up(n_real, tn)

    anchor = jnp.pad(anchor, ((0, m_pad - m_real), (0, 0)))
    contrast_t = jnp.pad(contrast_t, ((0, 0), (0, n_pad - n_real)))

    if mask is None:
        # Labels path (also covers SimCLR: identity mask == index-as-label).
        if labels is None:
            class_ids = jnp.arange(bsz, dtype=jnp.int32)
        else:
            labels = jnp.asarray(labels).reshape(-1)
            if labels.shape[0] != bsz:
                raise ValueError('Num of labels does not match num of features')
            class_ids = labels.astype(jnp.int32)
        anchor_lbl = jnp.tile(class_ids, anchor_count)
        contrast_lbl = jnp.tile(class_ids, contrast_count)
        anchor_lbl = jnp.pad(anchor_lbl, (0, m_pad - m_real),
                             constant_values=-1).reshape(m_pad, 1)
        contrast_lbl = jnp.pad(contrast_lbl, (0, n_pad - n_real),
                               constant_values=-2).reshape(1, n_pad)
        extra = (anchor_lbl, contrast_lbl)
        extra_specs = (pl.BlockSpec((tm, 1), lambda i, j: (i, 0)),
                       pl.BlockSpec((1, tn), lambda i, j: (0, j)))
        return _launch(_supcon_labels_kernel, anchor, contrast_t, extra,
                       extra_specs, m_real, tm, tn, temperature,
                       base_temperature, n_real)

    # Explicit (possibly asymmetric / non-binary) [bsz, bsz] mask: stream
    # pre-tiled mask blocks through the same online reduction.
    base_mask = jnp.asarray(mask, dtype=jnp.float32)
    full_mask = jnp.tile(base_mask, (anchor_count, contrast_count))
    full_mask = jnp.pad(full_mask, ((0, m_pad - m_real), (0, n_pad - n_real)))
    extra = (full_mask,)
    extra_specs = (pl.BlockSpec((tm, tn), lambda i, j: (i, j)),)
    return _launch(_supcon_mask_kernel, anchor, contrast_t, extra,
                   extra_specs, m_real, tm, tn, temperature,
                   base_temperature, n_real)


# ---------------------------------------------------------------------------
# Pure-JAX reference (transliteration of the PyTorch forward) for validation.
# ---------------------------------------------------------------------------
def _supcon_loss_ref(features, labels=None, mask=None, *, temperature=0.07,
                     contrast_mode='all', base_temperature=0.07):
    feats = features.reshape(features.shape[0], features.shape[1], -1)
    feats = feats.astype(jnp.float32)
    bsz, n_views = feats.shape[0], feats.shape[1]
    if labels is None and mask is None:
        base_mask = jnp.eye(bsz, dtype=jnp.float32)
    elif labels is not None:
        lab = jnp.asarray(labels).reshape(-1, 1)
        base_mask = (lab == lab.T).astype(jnp.float32)
    else:
        base_mask = jnp.asarray(mask, dtype=jnp.float32)
    contrast_count = n_views
    contrast = jnp.transpose(feats, (1, 0, 2)).reshape(contrast_count * bsz, -1)
    if contrast_mode == 'one':
        anchor = feats[:, 0]
        anchor_count = 1
    else:
        anchor = contrast
        anchor_count = contrast_count
    logits = anchor @ contrast.T / temperature
    logits = logits - jnp.max(logits, axis=1, keepdims=True)
    full_mask = jnp.tile(base_mask, (anchor_count, contrast_count))
    m_rows = anchor_count * bsz
    idx = jnp.arange(m_rows)
    logits_mask = jnp.ones_like(full_mask).at[idx, idx].set(0.0)
    full_mask = full_mask * logits_mask
    exp_logits = jnp.exp(logits) * logits_mask
    log_prob = logits - jnp.log(exp_logits.sum(1, keepdims=True))
    mean_log_prob_pos = (full_mask * log_prob).sum(1) / full_mask.sum(1)
    loss = -(temperature / base_temperature) * mean_log_prob_pos
    return loss.mean()


if __name__ == "__main__":
    key = jax.random.PRNGKey(0)
    k1, k2 = jax.random.split(key)

    def _check(got, want, name, tol=2e-4):
        got = jax.block_until_ready(got)
        assert jnp.isfinite(got), (name, got)
        assert jnp.allclose(got, want, rtol=tol, atol=tol), (name, got, want)

    # --- small case: bsz=4, n_views=2, dim=32 ------------------------------
    bsz, n_views, dim = 4, 2, 32
    feats = jax.random.normal(k1, (bsz, n_views, dim), dtype=jnp.float32)
    feats = feats / jnp.linalg.norm(feats, axis=-1, keepdims=True)
    labels = jnp.array([0, 1, 0, 1], dtype=jnp.int32)

    out = supcon_loss(feats, labels=labels)
    _check(out, _supcon_loss_ref(feats, labels=labels), "labels/all")

    out = supcon_loss(feats, labels=labels, contrast_mode='one')
    _check(out, _supcon_loss_ref(feats, labels=labels, contrast_mode='one'),
           "labels/one")

    eq_mask = (labels.reshape(-1, 1) == labels.reshape(1, -1)).astype(jnp.float32)
    out = supcon_loss(feats, mask=eq_mask)
    _check(out, _supcon_loss_ref(feats, mask=eq_mask), "mask/all")

    out = supcon_loss(feats)  # SimCLR degenerate case (no labels, no mask)
    _check(out, _supcon_loss_ref(feats), "simclr/all")

    # --- multi-tile case (forces a 3x2 grid with row & column padding) -----
    bsz2, n_views2, dim2 = 80, 2, 64
    feats2 = jax.random.normal(k2, (bsz2, n_views2, dim2), dtype=jnp.float32)
    feats2 = feats2 / jnp.linalg.norm(feats2, axis=-1, keepdims=True)
    labels2 = (jnp.arange(bsz2) % 5).astype(jnp.int32)
    out = supcon_loss(feats2, labels=labels2, block_m=64, block_n=128)
    _check(out, _supcon_loss_ref(feats2, labels=labels2), "labels/all/tiled")

    print("KERNEL_OK")
</pallas_src>

<mosaic_0001>
module attributes {stable_mosaic.version = 11 : i64} {
  func.func @_supcon_labels_kernel(%arg0: i32, %arg1: i32, %arg2: memref<8x32xf32, #tpu.memory_space<vmem>>, %arg3: memref<32x128xf32, #tpu.memory_space<vmem>>, %arg4: memref<8x1xi32, #tpu.memory_space<vmem>>, %arg5: memref<1x128xi32, #tpu.memory_space<vmem>>, %arg6: memref<8x1xf32, #tpu.memory_space<vmem>>, %arg7: memref<8x1xf32, #tpu.memory_space<vmem>>, %arg8: memref<8x1xf32, #tpu.memory_space<vmem>>, %arg9: memref<8x1xf32, #tpu.memory_space<vmem>>, %arg10: memref<8x1xf32, #tpu.memory_space<vmem>>) attributes {dimension_semantics = [#tpu.dimension_semantics<parallel>, #tpu.dimension_semantics<arbitrary>], iteration_bounds = array<i64: 1, 1>, scalar_prefetch = 0 : i64, scratch_operands = 4 : i64, tpu.core_type = #tpu.core_type<tc>, window_params = [{transform_indices = @transform_0, window_bounds = array<i64: 8, 32>}, {transform_indices = @transform_1, window_bounds = array<i64: 32, 128>}, {transform_indices = @transform_2, window_bounds = array<i64: 8, 1>}, {transform_indices = @transform_3, window_bounds = array<i64: 1, 128>}, {transform_indices = @transform_4, window_bounds = array<i64: 8, 1>}]} {
    %c0_i32 = arith.constant 0 : i32
    %0 = arith.cmpi eq, %arg1, %c0_i32 : i32
    %1 = arith.extui %0 : i1 to i32
    %c0_i32_0 = arith.constant 0 : i32
    %2 = arith.cmpi ne, %1, %c0_i32_0 : i32
    scf.if %2 {
      %cst_37 = arith.constant -1.000000e+30 : f32
      %67 = vector.broadcast %cst_37 : f32 to vector<8x1xf32>
      %c0_38 = arith.constant 0 : index
      %c0_39 = arith.constant 0 : index
      %68 = vector.load %arg7[%c0_38, %c0_39] : memref<8x1xf32, #tpu.memory_space<vmem>>, vector<8x1xf32>
      tpu.vector_store %arg7[%c0_38, %c0_39], %67 {strides = array<i32>} : memref<8x1xf32, #tpu.memory_space<vmem>>, vector<8x1xf32>,
      %cst_40 = arith.constant 0.000000e+00 : f32
      %69 = vector.broadcast %cst_40 : f32 to vector<8x1xf32>
      %c0_41 = arith.constant 0 : index
      %c0_42 = arith.constant 0 : index
      %70 = vector.load %arg8[%c0_41, %c0_42] : memref<8x1xf32, #tpu.memory_space<vmem>>, vector<8x1xf32>
      tpu.vector_store %arg8[%c0_41, %c0_42], %69 {strides = array<i32>} : memref<8x1xf32, #tpu.memory_space<vmem>>, vector<8x1xf32>,
      %cst_43 = arith.constant 0.000000e+00 : f32
      %71 = vector.broadcast %cst_43 : f32 to vector<8x1xf32>
      %c0_44 = arith.constant 0 : index
      %c0_45 = arith.constant 0 : index
      %72 = vector.load %arg9[%c0_44, %c0_45] : memref<8x1xf32, #tpu.memory_space<vmem>>, vector<8x1xf32>
      tpu.vector_store %arg9[%c0_44, %c0_45], %71 {strides = array<i32>} : memref<8x1xf32, #tpu.memory_space<vmem>>, vector<8x1xf32>,
      %cst_46 = arith.constant 0.000000e+00 : f32
      %73 = vector.broadcast %cst_46 : f32 to vector<8x1xf32>
      %c0_47 = arith.constant 0 : index
      %c0_48 = arith.constant 0 : index
      %74 = vector.load %arg10[%c0_47, %c0_48] : memref<8x1xf32, #tpu.memory_space<vmem>>, vector<8x1xf32>
      tpu.vector_store %arg10[%c0_47, %c0_48], %73 {strides = array<i32>} : memref<8x1xf32, #tpu.memory_space<vmem>>, vector<8x1xf32>,
    } else {
    }
    %c0 = arith.constant 0 : index
    %c0_1 = arith.constant 0 : index
    %3 = vector.load %arg2[%c0, %c0_1] : memref<8x32xf32, #tpu.memory_space<vmem>>, vector<8x32xf32>
    %c0_2 = arith.constant 0 : index
    %c0_3 = arith.constant 0 : index
    %4 = vector.load %arg3[%c0_2, %c0_3] : memref<32x128xf32, #tpu.memory_space<vmem>>, vector<32x128xf32>
    %cst = arith.constant dense<0.000000e+00> : vector<8x128xf32>
    %5 = tpu.matmul %3, %4, %cst {dimension_numbers = #tpu.dot_dimension_numbers<[1], [0], [0], [1], [0, 0, 1, 1], [], []>} : vector<8x32xf32>, vector<32x128xf32>, vector<8x128xf32> -> vector<8x128xf32>
    %cst_4 = arith.constant 14.2857141 : f32
    %6 = vector.broadcast %cst_4 : f32 to vector<8x128xf32>
    %7 = arith.mulf %5, %6 : vector<8x128xf32>
    %c8_i32 = arith.constant 8 : i32
    %8 = arith.muli %arg0, %c8_i32 : i32
    %9 = tpu.iota {dimensions = array<i32: 0>} : vector<8x1xi32>
    %10 = vector.broadcast %8 : i32 to vector<8x1xi32>
    %11 = arith.addi %10, %9 : vector<8x1xi32>
    %c128_i32 = arith.constant 128 : i32
    %12 = arith.muli %arg1, %c128_i32 : i32
    %13 = tpu.iota {dimensions = array<i32: 1>} : vector<1x128xi32>
    %14 = vector.broadcast %12 : i32 to vector<1x128xi32>
    %15 = arith.addi %14, %13 : vector<1x128xi32>
    %16 = vector.broadcast %11 : vector<8x1xi32> to vector<8x128xi32>
    %17 = vector.broadcast %15 : vector<1x128xi32> to vector<8x128xi32>
    %18 = arith.cmpi ne, %16, %17 : vector<8x128xi32>
    %c8_i32_5 = arith.constant 8 : i32
    %19 = vector.broadcast %c8_i32_5 : i32 to vector<1x128xi32>
    %20 = arith.cmpi slt, %15, %19 : vector<1x128xi32>
    %21 = vector.broadcast %20 : vector<1x128xi1> to vector<8x128xi1>
    %22 = arith.andi %18, %21 : vector<8x128xi1>
    %c0_6 = arith.constant 0 : index
    %c0_7 = arith.constant 0 : index
    %23 = vector.load %arg4[%c0_6, %c0_7] : memref<8x1xi32, #tpu.memory_space<vmem>>, vector<8x1xi32>
    %c0_8 = arith.constant 0 : index
    %c0_9 = arith.constant 0 : index
    %24 = vector.load %arg5[%c0_8, %c0_9] : memref<1x128xi32, #tpu.memory_space<vmem>>, vector<1x128xi32>
    %25 = vector.broadcast %23 : vector<8x1xi32> to vector<8x128xi32>
    %26 = vector.broadcast %24 : vector<1x128xi32> to vector<8x128xi32>
    %27 = arith.cmpi eq, %25, %26 : vector<8x128xi32>
    %28 = arith.andi %22, %27 : vector<8x128xi1>
    %cst_10 = arith.constant 0.000000e+00 : f32
    %29 = vector.broadcast %cst_10 : f32 to vector<8x128xf32>
    %30 = arith.select %28, %7, %29 : vector<8x128xi1>, vector<8x128xf32>
    %cst_11 = arith.constant 1.000000e+00 : f32
    %cst_12 = arith.constant 0.000000e+00 : f32
    %31 = vector.broadcast %cst_11 : f32 to vector<8x128xf32>
    %32 = vector.broadcast %cst_12 : f32 to vector<8x128xf32>
    %33 = arith.select %28, %31, %32 : vector<8x128xi1>, vector<8x128xf32>
    %cst_13 = arith.constant -1.000000e+30 : f32
    %34 = vector.broadcast %cst_13 : f32 to vector<8x128xf32>
    %35 = arith.select %22, %7, %34 : vector<8x128xi1>, vector<8x128xf32>
    %c0_14 = arith.constant 0 : index
    %c0_15 = arith.constant 0 : index
    %36 = vector.load %arg7[%c0_14, %c0_15] : memref<8x1xf32, #tpu.memory_space<vmem>>, vector<8x1xf32>
    %cst_16 = arith.constant dense<0xFF800000> : vector<8xf32>
    %37 = vector.multi_reduction <maximumf>, %35, %cst_16 [1] : vector<8x128xf32> to vector<8xf32>
    %38 = vector.shape_cast %37 : vector<8xf32> to vector<8x1xf32>
    %39 = arith.maximumf %36, %38 : vector<8x1xf32>
    %40 = arith.subf %36, %39 : vector<8x1xf32>
    %41 = math.exp %40 : vector<8x1xf32>
    %42 = vector.broadcast %39 : vector<8x1xf32> to vector<8x128xf32>
    %43 = arith.subf %35, %42 : vector<8x128xf32>
    %44 = math.exp %43 : vector<8x128xf32>
    %cst_17 = arith.constant 0.000000e+00 : f32
    %45 = vector.broadcast %cst_17 : f32 to vector<8x128xf32>
    %46 = arith.select %22, %44, %45 : vector<8x128xi1>, vector<8x128xf32>
    %c0_18 = arith.constant 0 : index
    %c0_19 = arith.constant 0 : index
    %47 = vector.load %arg8[%c0_18, %c0_19] : memref<8x1xf32, #tpu.memory_space<vmem>>, vector<8x1xf32>
    %48 = arith.mulf %41, %47 : vector<8x1xf32>
    %cst_20 = arith.constant dense<0.000000e+00> : vector<8xf32>
    %49 = vector.multi_reduction <add>, %46, %cst_20 [1] : vector<8x128xf32> to vector<8xf32>
    %50 = vector.shape_cast %49 : vector<8xf32> to vector<8x1xf32>
    %51 = arith.addf %48, %50 : vector<8x1xf32>
    %c0_21 = arith.constant 0 : index
    %c0_22 = arith.constant 0 : index
    %52 = vector.load %arg8[%c0_21, %c0_22] : memref<8x1xf32, #tpu.memory_space<vmem>>, vector<8x1xf32>
    tpu.vector_store %arg8[%c0_21, %c0_22], %51 {strides = array<i32>} : memref<8x1xf32, #tpu.memory_space<vmem>>, vector<8x1xf32>,
    %c0_23 = arith.constant 0 : index
    %c0_24 = arith.constant 0 : index
    %53 = vector.load %arg7[%c0_23, %c0_24] : memref<8x1xf32, #tpu.memory_space<vmem>>, vector<8x1xf32>
    tpu.vector_store %arg7[%c0_23, %c0_24], %39 {strides = array<i32>} : memref<8x1xf32, #tpu.memory_space<vmem>>, vector<8x1xf32>,
    %c0_25 = arith.constant 0 : index
    %c0_26 = arith.constant 0 : index
    %54 = vector.load %arg9[%c0_25, %c0_26] : memref<8x1xf32, #tpu.memory_space<vmem>>, vector<8x1xf32>
    %cst_27 = arith.constant dense<0.000000e+00> : vector<8xf32>
    %55 = vector.multi_reduction <add>, %30, %cst_27 [1] : vector<8x128xf32> to vector<8xf32>
    %56 = vector.shape_cast %55 : vector<8xf32> to vector<8x1xf32>
    %57 = arith.addf %54, %56 : vector<8x1xf32>
    %c0_28 = arith.constant 0 : index
    %c0_29 = arith.constant 0 : index
    %58 = vector.load %arg9[%c0_28, %c0_29] : memref<8x1xf32, #tpu.memory_space<vmem>>, vector<8x1xf32>
    tpu.vector_store %arg9[%c0_28, %c0_29], %57 {strides = array<i32>} : memref<8x1xf32, #tpu.memory_space<vmem>>, vector<8x1xf32>,
    %c0_30 = arith.constant 0 : index
    %c0_31 = arith.constant 0 : index
    %59 = vector.load %arg10[%c0_30, %c0_31] : memref<8x1xf32, #tpu.memory_space<vmem>>, vector<8x1xf32>
    %cst_32 = arith.constant dense<0.000000e+00> : vector<8xf32>
    %60 = vector.multi_reduction <add>, %33, %cst_32 [1] : vector<8x128xf32> to vector<8xf32>
    %61 = vector.shape_cast %60 : vector<8xf32> to vector<8x1xf32>
    %62 = arith.addf %59, %61 : vector<8x1xf32>
    %c0_33 = arith.constant 0 : index
    %c0_34 = arith.constant 0 : index
    %63 = vector.load %arg10[%c0_33, %c0_34] : memref<8x1xf32, #tpu.memory_space<vmem>>, vector<8x1xf32>
    tpu.vector_store %arg10[%c0_33, %c0_34], %62 {strides = array<i32>} : memref<8x1xf32, #tpu.memory_space<vmem>>, vector<8x1xf32>,
    %c0_i32_35 = arith.constant 0 : i32
    %64 = arith.cmpi eq, %arg1, %c0_i32_35 : i32
    %65 = arith.extui %64 : i1 to i32
    %c0_i32_36 = arith.constant 0 : i32
    %66 = arith.cmpi ne, %65, %c0_i32_36 : i32
    scf.if %66 {
      %c0_37 = arith.constant 0 : index
      %c0_38 = arith.constant 0 : index
      %67 = vector.load %arg7[%c0_37, %c0_38] : memref<8x1xf32, #tpu.memory_space<vmem>>, vector<8x1xf32>
      %c0_39 = arith.constant 0 : index
      %c0_40 = arith.constant 0 : index
      %68 = vector.load %arg8[%c0_39, %c0_40] : memref<8x1xf32, #tpu.memory_space<vmem>>, vector<8x1xf32>
      %69 = math.log %68 : vector<8x1xf32>
      %70 = arith.addf %67, %69 : vector<8x1xf32>
      %c0_41 = arith.constant 0 : index
      %c0_42 = arith.constant 0 : index
      %71 = vector.load %arg10[%c0_41, %c0_42] : memref<8x1xf32, #tpu.memory_space<vmem>>, vector<8x1xf32>
      %c0_43 = arith.constant 0 : index
      %c0_44 = arith.constant 0 : index
      %72 = vector.load %arg9[%c0_43, %c0_44] : memref<8x1xf32, #tpu.memory_space<vmem>>, vector<8x1xf32>
      %cst_45 = arith.constant 1.000000e+00 : f32
      %73 = vector.broadcast %cst_45 : f32 to vector<8x1xf32>
      %74 = arith.maximumf %71, %73 : vector<8x1xf32>
      %75 = arith.divf %72, %74 : vector<8x1xf32>
      %76 = arith.subf %75, %70 : vector<8x1xf32>
      %cst_46 = arith.constant 0.000000e+00 : f32
      %cst_47 = arith.constant 1.000000e+00 : f32
      %77 = arith.subf %cst_46, %cst_47 : f32
      %78 = vector.broadcast %77 : f32 to vector<8x1xf32>
      %79 = arith.mulf %78, %76 : vector<8x1xf32>
      %cst_48 = arith.constant 0.000000e+00 : f32
      %80 = vector.broadcast %cst_48 : f32 to vector<8x1xf32>
      %81 = arith.cmpf ogt, %71, %80 : vector<8x1xf32>
      %cst_49 = arith.constant 0.000000e+00 : f32
      %82 = vector.broadcast %cst_49 : f32 to vector<8x1xf32>
      %83 = arith.select %81, %79, %82 : vector<8x1xi1>, vector<8x1xf32>
      %c0_50 = arith.constant 0 : index
      %c0_51 = arith.constant 0 : index
      %84 = vector.load %arg6[%c0_50, %c0_51] : memref<8x1xf32, #tpu.memory_space<vmem>>, vector<8x1xf32>
      tpu.vector_store %arg6[%c0_50, %c0_51], %83 {strides = array<i32>} : memref<8x1xf32, #tpu.memory_space<vmem>>, vector<8x1xf32>,
    } else {
    }
    return
  }
  func.func @transform_0(%arg0: i32, %arg1: i32) -> (i32, i32) {
    %c0_i32 = arith.constant 0 : i32
    %c0_i32_0 = arith.constant 0 : i32
    return %arg0, %c0_i32 : i32, i32
  }
  func.func @transform_1(%arg0: i32, %arg1: i32) -> (i32, i32) {
    %c0_i32 = arith.constant 0 : i32
    %c0_i32_0 = arith.constant 0 : i32
    return %c0_i32, %arg1 : i32, i32
  }
  func.func @transform_2(%arg0: i32, %arg1: i32) -> (i32, i32) {
    %c0_i32 = arith.constant 0 : i32
    %c0_i32_0 = arith.constant 0 : i32
    return %arg0, %c0_i32 : i32, i32
  }
  func.func @transform_3(%arg0: i32, %arg1: i32) -> (i32, i32) {
    %c0_i32 = arith.constant 0 : i32
    %c0_i32_0 = arith.constant 0 : i32
    return %c0_i32, %arg1 : i32, i32
  }
  func.func @transform_4(%arg0: i32, %arg1: i32) -> (i32, i32) {
    %c0_i32 = arith.constant 0 : i32
    %c0_i32_0 = arith.constant 0 : i32
    return %arg0, %c0_i32 : i32, i32
  }
}

</mosaic_0001>

<llo_original>
// kernel: tpu_custom_call.1
$region0: #{tpu_custom_call.1}
  #allocation0 [shape = 'u32[]', space=smem, size = 0x4, offset = 0x4, fixed_abs, tag = 'smem constant byte address 0x4 - core index']
  #allocation1 [shape = 'u32[144,128]{1,0:T(1,128)}', space=vmem, size = 0x12000, scoped, tag = 'internal scratch']
  #allocation2 [shape = 'f32[8,1]{1,0:T(8,128)}', space=vmem, size = 0x1000, scoped, tag = 'scratch operand']
  #allocation3 [shape = 'f32[8,1]{1,0:T(8,128)}', space=vmem, size = 0x1000, scoped, tag = 'scratch operand']
  #allocation4 [shape = 'f32[8,1]{1,0:T(8,128)}', space=vmem, size = 0x1000, scoped, tag = 'scratch operand']
  #allocation5 [shape = 'f32[8,1]{1,0:T(8,128)}', space=vmem, size = 0x1000, scoped, tag = 'scratch operand']
  %s0 = inlined_call_operand.vmem [shape: f32[8,32], index: 0, kind: input, shape index: {}]
  %s1 = inlined_call_operand.hbm [shape: f32[32,128], index: 1, kind: input, shape index: {}]
  %s2 = inlined_call_operand.vmem [shape: s32[8,1], index: 2, kind: input, shape index: {}]
  %s3 = inlined_call_operand.vmem [shape: s32[1,128], index: 3, kind: input, shape index: {}]
  %s4 = inlined_call_operand.vmem [shape: f32[8,1], index: 4, kind: output, shape index: {}]
  %s5 = sld [smem:[#allocation0]]
  $region38: #{tpu_custom_call.1} parent=0
    _
  %s7 = ssub.s32 1, %s5
  %s8 = scalar_select 0, %s7, %s5
  $region1: #{tpu_custom_call.1} parent=0
    #allocation6 [shape = 'u8[16384]{0}', space=vmem, size = 0x4000, scoped, tag = 'input window, operand 1, single buffered']
    #allocation7 [shape = 's32[1]{0}', space=sflag, size = 0x4, scoped, tag = 'scoped memory for tpu_custom_call.1']
    %9 = vsyncpa [#allocation7], 0
    // Predicated region
    $region2: #{tpu_custom_call.1} parent=1 // pred_check
      _
    $region3: #{tpu_custom_call.1} parent=1 // pred_check_branch
      %11 = sbr.rel (0) target = $region5
    $region4: #{tpu_custom_call.1} parent=1 // pred_region
      _
    $region5: #{tpu_custom_call.1} parent=1 // pred_fallthru
      _
    // Predicated region
    $region6: #{tpu_custom_call.1} parent=1 // pred_check
      _
    $region7: #{tpu_custom_call.1} parent=1 // pred_check_branch
      %13 = sbr.rel (0) target = $region9
    $region8: #{tpu_custom_call.1} parent=1 // pred_region
      %s15 = ssub.s32 512, 512
      %16 = vsyncadd [#allocation7], %s15
      %s17 = sshll.u32 [#allocation6], 4
      %s18 = int_to_ptr.vmem [resolvable:$true] %s17
      %23 = dma.hbm_to_vmem [thread:$0]  %s1, 512, %s18, [#allocation7], 128, 128, 8
    $region9: #{tpu_custom_call.1} parent=1 // pred_fallthru
      _
    // Predicated region
    $region10: #{tpu_custom_call.1} parent=1 // pred_check
      _
    $region11: #{tpu_custom_call.1} parent=1 // pred_check_branch
      %25 = sbr.rel (0) target = $region13
    $region12: #{tpu_custom_call.1} parent=1 // pred_region
      _
    $region13: #{tpu_custom_call.1} parent=1 // pred_fallthru
      _
    // Predicated region
    $region14: #{tpu_custom_call.1} parent=1 // pred_check
      _
    $region15: #{tpu_custom_call.1} parent=1 // pred_check_branch
      %27 = sbr.rel (0) target = $region17
    $region16: #{tpu_custom_call.1} parent=1 // pred_region
      _
    $region17: #{tpu_custom_call.1} parent=1 // pred_fallthru
      _
    // Predicated region
    $region18: #{tpu_custom_call.1} parent=1 // pred_check
      _
    $region19: #{tpu_custom_call.1} parent=1 // pred_check_branch
      %29 = sbr.rel (0) target = $region21
    $region20: #{tpu_custom_call.1} parent=1 // pred_region
      %30 = dma.done [#allocation7], 512
    $region21: #{tpu_custom_call.1} parent=1 // pred_fallthru
      _
    %p31 = scmp.eq.s32.totalorder 0, 0
    // Predicated region
    $region22: #{tpu_custom_call.1} parent=1 // pred_check
      %p32 = pneg %p31
    $region23: #{tpu_custom_call.1} parent=1 // pred_check_branch
      %34 = sbr.rel (%p32) target = $region25
    $region24: #{tpu_custom_call.1} parent=1 // pred_region
      %vm35 = vcmask 7168
      %36 = vst.msk [vmem:[#allocation2] sm:$0xff] %vm35, -1e+30
      %37 = vst.msk [vmem:[#allocation3] sm:$0xff] %vm35, 0.0
      %38 = vst.msk [vmem:[#allocation4] sm:$0xff] %vm35, 0.0
      %39 = vst.msk [vmem:[#allocation5] sm:$0xff] %vm35, 0.0
    $region25: #{tpu_custom_call.1} parent=1 // pred_fallthru
      _
    %v40 = vld [vmem:[%s0] sm:$0xff]
    %v41 = vld [vmem:[#allocation6] sm:$0xff]
    %v42 = vld [vmem:[#allocation6 + $0x8] sm:$0xff]
    %v43 = vld [vmem:[#allocation6 + $0x10] sm:$0xff]
    %v44 = vld [vmem:[#allocation6 + $0x18] sm:$0xff]
    %vm45 = vcmask 261120
    %v47 = vsel %vm45, %v40, 0
    %49 = vmatprep.subr.mxu0 0.0
    %50 = vmatpush1.msra.mxu0 %v41
    %51 = vmatprep.subr.mxu0 0.0
    %52 = vmatpush1.msra.mxu0 %v42
    %53 = vmatprep.subr.mxu0 0.0
    %54 = vmatpush1.msra.mxu0 %v43
    %55 = vmatprep.subr.mxu0 0.0
    %56 = vmatpush1.msra.mxu0 %v44
    %57 = vmatprep.subr.mxu0 0.0
    %58 = vmatpush1.msra.mxu0 0.0
    %59 = vmatprep.subr.mxu0 0.0
    %60 = vmatpush1.msra.mxu0 0.0
    %61 = vmatprep.subr.mxu0 0.0
    %62 = vmatpush1.msra.mxu0 0.0
    %63 = vmatprep.subr.mxu0 0.0
    %64 = vmatpush1.msra.mxu0 0.0
    %65 = vmatprep.subr.mxu0 0.0
    %66 = vmatpush1.msra.mxu0 0.0
    %67 = vmatprep.subr.mxu0 0.0
    %68 = vmatpush1.msra.mxu0 0.0
    %69 = vmatprep.subr.mxu0 0.0
    %70 = vmatpush1.msra.mxu0 0.0
    %71 = vmatprep.subr.mxu0 0.0
    %72 = vmatpush1.msra.mxu0 0.0
    %73 = vmatprep.subr.mxu0 0.0
    %74 = vmatpush1.msra.mxu0 0.0
    %75 = vmatprep.subr.mxu0 0.0
    %76 = vmatpush1.msra.mxu0 0.0
    %77 = vmatprep.subr.mxu0 0.0
    %78 = vmatpush1.msra.mxu0 0.0
    %79 = vmatprep.subr.mxu0 0.0
    %80 = vmatpush1.msra.mxu0 0.0
    %81 = vmatprep.subr.mxu0 0.0
    %82 = vmatpush1.msra.mxu0 0.0
    %83 = vmatprep.subr.mxu0 0.0
    %84 = vmatpush1.msra.mxu0 0.0
    %85 = vmatprep.subr.mxu0 0.0
    %86 = vmatpush1.msra.mxu0 0.0
    %87 = vmatprep.subr.mxu0 0.0
    %88 = vmatpush1.msra.mxu0 0.0
    %89 = vmatprep.subr.mxu0 0.0
    %90 = vmatpush1.msra.mxu0 0.0
    %91 = vmatprep.subr.mxu0 0.0
    %92 = vmatpush1.msra.mxu0 0.0
    %93 = vmatprep.subr.mxu0 0.0
    %94 = vmatpush1.msra.mxu0 0.0
    %95 = vmatprep.subr.mxu0 0.0
    %96 = vmatpush1.msra.mxu0 0.0
    %97 = vmatprep.subr.mxu0 0.0
    %98 = vmatpush1.msra.mxu0 0.0
    %99 = vmatprep.subr.mxu0 0.0
    %100 = vmatpush1.msra.mxu0 0.0
    %101 = vmatprep.subr.mxu0 0.0
    %102 = vmatpush1.msra.mxu0 0.0
    %103 = vmatprep.subr.mxu0 0.0
    %104 = vmatpush1.msra.mxu0 0.0
    %105 = vmatprep.subr.mxu0 0.0
    %106 = vmatpush1.msra.mxu0 0.0
    %107 = vmatprep.subr.mxu0 0.0
    %108 = vmatpush1.msra.mxu0 0.0
    %109 = vmatprep.subr.mxu0 0.0
    %110 = vmatpush1.msra.mxu0 0.0
    %111 = vmatprep.subr.mxu0 0.0
    %112 = vmatpush1.msra.mxu0 0.0
    %113 = vmatprep.mubr.f32.mxu0 0.0
    %114 = vmatmul.mubr.f32.gmra.mrb[0].mxu0 %v47
    %v115 = vpop.f32.mrb[0].mxu0
    %v116 = vadd.f32 0.0, %v115
    %v117 = vpop.f32.mrb[0].mxu0
    %118 = vdwg.mxu0
    %v119 = vmul.f32 %v116, 14.285714
    %s120 = smul.u32 0, 8
    %v121 = vlaneseq
    %v122 = vshrl.u32 %v121, 7
    %v123 = vstv %s120
    %v124 = vadd.s32 %v123, %v122
    %s125 = smul.u32 0, 128
    %v126 = vlaneseq
    %v127 = vand.u32 %v126, 127
    %v128 = vstv %s125
    %v129 = vadd.s32 %v128, %v127
    %vm130 = vcmp.ne.s32.totalorder %v124, %v129
    %vm131 = vcmp.lt.s32.totalorder %v129, 8
    %v132 = vsel %vm131, 1, 0
    %vm133 = vcmp.eq.s32.totalorder %v132, 1
    %vm134 = vmand %vm130, %vm133
    %v135 = vld [vmem:[%s2] sm:$0xff]
    %v136 = vld [vmem:[%s3] sm:$0x1]
    %137 = vset.pattern.permute.xlu0 0
    %138 = vperm.xlu0 %137, %v135
    %v139 = vpop.permute.xlu0 %138
    %v140 = vlaneseq
    %v141 = vshrl.u32 %v140, 7
    %v142 = vsub.s32 0, %v141
    %v143 = vrot.slane %v136, %v142
    %vm144 = vcmp.eq.s32.totalorder %v139, %v143
    %vm145 = vmand %vm134, %vm144
    %v146 = vsel %vm145, %v119, 0.0
    %v147 = vsel %vm145, 1.0, 0.0
    %v148 = vsel %vm134, %v119, -1e+30
    %v149 = vld [vmem:[#allocation2] sm:$0xff]
    %150 = vmax.xlane.f32.xlu0 %v148
    %v151 = vpop.xlane.xlu0 %150
    %v152 = vmax.f32 %v149, %v151
    %v153 = vsub.f32 %v149, %v152
    %v154 = vmul.f32 %v153, 1.442695
    %v155 = vpow.pop %v154
    %157 = vset.pattern.permute.xlu0 0
    %158 = vperm.xlu0 %157, %v152
    %v159 = vpop.permute.xlu0 %158
    %v161 = vsub.f32 %v148, %v159
    %v162 = vmul.f32 %v161, 1.442695
    %v163 = vpow.pop %v162
    %v164 = vsel %vm134, %v163, 0.0
    %v165 = vld [vmem:[#allocation3] sm:$0xff]
    %v166 = vmul.f32 %v155, %v165
    %167 = vadd.xlane.f32.xlu0 %v164
    %v168 = vpop.xlane.xlu0 %167
    %v169 = vadd.f32 %v166, %v168
    %vm170 = vcmask 7168
    %171 = vst.msk [vmem:[#allocation3] sm:$0xff] %vm170, %v169
    %172 = vst.msk [vmem:[#allocation2] sm:$0xff] %vm170, %v152
    %v173 = vld [vmem:[#allocation4] sm:$0xff]
    %174 = vadd.xlane.f32.xlu0 %v146
    %v175 = vpop.xlane.xlu0 %174
    %v176 = vadd.f32 %v173, %v175
    %177 = vst.msk [vmem:[#allocation4] sm:$0xff] %vm170, %v176
    %v178 = vld [vmem:[#allocation5] sm:$0xff]
    %179 = vadd.xlane.f32.xlu0 %v147
    %v180 = vpop.xlane.xlu0 %179
    %v181 = vadd.f32 %v178, %v180
    %182 = vst.msk [vmem:[#allocation5] sm:$0xff] %vm170, %v181
    // Predicated region
    $region26: #{tpu_custom_call.1} parent=1 // pred_check
      %p183 = pneg %p31
    $region27: #{tpu_custom_call.1} parent=1 // pred_check_branch
      %185 = sbr.rel (%p183) target = $region29
    $region28: #{tpu_custom_call.1} parent=1 // pred_region
      %v186 = vld [vmem:[#allocation2] sm:$0xff]
      %v187 = vld [vmem:[#allocation3] sm:$0xff]
      %v188 = vlog2.pop %v187
      %v189 = vmul.f32 %v188, 0.6931472
      %v190 = vadd.f32 %v186, %v189
      %v191 = vld [vmem:[#allocation5] sm:$0xff]
      %v192 = vld [vmem:[#allocation4] sm:$0xff]
      %v193 = vmax.f32 %v191, 1.0
      %v194 = vrcp.pop %v193
      %v195 = vmul.f32 %v192, %v194
      %v196 = vsub.f32 %v195, %v190
      %v197 = vmul.f32 %v196, -1.0
      %vm198 = vcmp.gt.f32.partialorder %v191, 0.0
      %v199 = vsel %vm198, %v197, 0.0
      %200 = vst.msk [vmem:[%s4] sm:$0xff] %vm170, %v199
    $region29: #{tpu_custom_call.1} parent=1 // pred_fallthru
      _
    // Predicated region
    $region30: #{tpu_custom_call.1} parent=1 // pred_check
      _
    $region31: #{tpu_custom_call.1} parent=1 // pred_check_branch
      %202 = sbr.rel (0) target = $region33
    $region32: #{tpu_custom_call.1} parent=1 // pred_region
      _
    $region33: #{tpu_custom_call.1} parent=1 // pred_fallthru
      _
    // Predicated region
    $region34: #{tpu_custom_call.1} parent=1 // pred_check
      _
    $region35: #{tpu_custom_call.1} parent=1 // pred_check_branch
      %204 = sbr.rel (0) target = $region37
    $region36: #{tpu_custom_call.1} parent=1 // pred_region
      _
    $region37: #{tpu_custom_call.1} parent=1 // pred_fallthru
      _
    %205 = vsyncpa [#allocation7], 1

</llo_original>
